<compile_context>
chip_gen: v6e
topology: v6e:2x2x1
jax: 0.10.0
libtpu: 0.0.40
codegen_flags: <defaults>
</compile_context>

<pallas_src>
import numpy as np
import jax
import jax.numpy as jnp
from jax import lax
from jax.experimental import pallas as pl
from jax.experimental.pallas import tpu as pltpu

LN_EPS = 1e-5


def _conv_ln_kernel(x_ref, w_ref, g_ref, b_ref, o_ref):
    # x_ref : (TILE, 3C)  im2col rows (tap0 | tap1 | tap2 concatenated along K)
    # w_ref : (3C, 2C)    fused conv weight (tap-major rows, transposed to in x out)
    # g_ref / b_ref : (1, 2C)  LayerNorm affine params
    # o_ref : (TILE, 2C)
    y = jnp.dot(x_ref[...], w_ref[...], preferred_element_type=jnp.float32)

    # LayerNorm over the channel (last) dimension, biased variance, eps=1e-5 (f32).
    mean = jnp.mean(y, axis=-1, keepdims=True)
    centered = y - mean
    var = jnp.mean(centered * centered, axis=-1, keepdims=True)
    y_norm = centered * lax.rsqrt(var + LN_EPS)
    out = y_norm * g_ref[...].astype(jnp.float32) + b_ref[...].astype(jnp.float32)

    o_ref[...] = out.astype(o_ref.dtype)


def _round_up(a, m):
    return (a + m - 1) // m * m


def conv_downsampler(x, conv_w, ln_gamma, ln_beta, *, row_tile=None):
    """x: (B, L, C).  conv_w: (2C, C, 3) (PyTorch Conv1d layout: out, in, k).
    ln_gamma / ln_beta: (2C,).  Returns (B, L_out, 2C)."""
    B, L, C = x.shape
    C2 = 2 * C
    K = 3 * C
    L_out = (L - 1) // 2 + 1  # stride 2, pad 1, k 3

    # --- wrapper-side layout glue: ONE fused im2col slab, no per-tap HBM copies ---
    x_pad = jnp.pad(x, ((0, 0), (1, 1), (0, 0)))                       # (B, L+2, C)
    im2col = jnp.concatenate(
        [x_pad[:, k:k + 2 * L_out:2, :] for k in range(3)], axis=-1)   # (B, L_out, 3C)
    rows = B * L_out
    im2col = im2col.reshape(rows, K)

    # Fused conv weight: rows ordered tap-major to match the im2col concat order.
    # w_fused[k*C + c_in, c_out] == conv_w[c_out, c_in, k]
    w_fused = jnp.transpose(conv_w, (2, 1, 0)).reshape(K, C2)
    gamma2d = ln_gamma.reshape(1, C2)
    beta2d = ln_beta.reshape(1, C2)

    # --- row tiling: batch folded into rows; tile picked to stay well under VMEM ---
    if row_tile is None:
        itemsize = max(jnp.dtype(x.dtype).itemsize, 2)
        budget = 16 * 1024 * 1024                    # comfortably < 32 MiB scoped VMEM
        per_row = 2 * (K + C2) * itemsize            # double-buffered in + out tile
        row_tile = min(512, max(8, budget // per_row), _round_up(rows, 8))
        row_tile = max(8, (row_tile // 8) * 8)       # sublane multiple of 8
    rows_pad = _round_up(rows, row_tile)
    if rows_pad != rows:
        im2col = jnp.pad(im2col, ((0, rows_pad - rows), (0, 0)))

    grid = (rows_pad // row_tile,)

    itemsize = jnp.dtype(x.dtype).itemsize
    cost = pl.CostEstimate(
        flops=2 * rows * K * C2 + 8 * rows * C2,
        transcendentals=rows,
        bytes_accessed=itemsize * (rows_pad * K + K * C2 + 2 * C2 + rows_pad * C2),
    )

    # TODO(synk): for tiny channel counts (2C < 128) the output stores are lane-masked;
    # a lane-dense output repack is only worth it for production channel sizes.
    out = pl.pallas_call(
        _conv_ln_kernel,
        out_shape=jax.ShapeDtypeStruct((rows_pad, C2), x.dtype),
        grid_spec=pltpu.PrefetchScalarGridSpec(
            num_scalar_prefetch=0,
            grid=grid,
            in_specs=[pl.BlockSpec((row_tile, K), lambda i: (i, 0)),
                      pl.BlockSpec((K, C2), lambda i: (0, 0)),
                      pl.BlockSpec((1, C2), lambda i: (0, 0)),
                      pl.BlockSpec((1, C2), lambda i: (0, 0))],
            out_specs=pl.BlockSpec((row_tile, C2), lambda i: (i, 0)),
        ),
        compiler_params=pltpu.CompilerParams(
            dimension_semantics=("parallel",)),
        cost_estimate=cost,
    )(im2col, w_fused, gamma2d, beta2d)

    return out[:rows].reshape(B, L_out, C2)


def _reference(x, conv_w, ln_gamma, ln_beta):
    # Pure-JAX reference mirroring the PyTorch module.
    x_ncw = jnp.transpose(x, (0, 2, 1))  # (B, C, L)
    y = lax.conv_general_dilated(
        x_ncw, conv_w, window_strides=(2,), padding=((1, 1),),
        dimension_numbers=("NCH", "OIH", "NCH"))
    y = jnp.transpose(y, (0, 2, 1))      # (B, L_out, 2C)
    mean = jnp.mean(y, axis=-1, keepdims=True)
    var = jnp.mean((y - mean) ** 2, axis=-1, keepdims=True)
    return (y - mean) / jnp.sqrt(var + LN_EPS) * ln_gamma + ln_beta


if __name__ == "__main__":
    B, L, dim = 2, 16, 32

    key = jax.random.PRNGKey(0)
    kx, kw = jax.random.split(key)
    x = jax.random.normal(kx, (B, L, dim), dtype=jnp.float32)
    # Conv1d weight: (out_channels=2*dim, in_channels=dim, kernel_size=3)
    conv_w = (jax.random.normal(kw, (2 * dim, dim, 3), dtype=jnp.float32)
              * (1.0 / np.sqrt(dim * 3)))
    # LayerNorm affine params (PyTorch defaults: ones / zeros)
    ln_gamma = jnp.ones((2 * dim,), dtype=jnp.float32)
    ln_beta = jnp.zeros((2 * dim,), dtype=jnp.float32)

    out = conv_downsampler(x, conv_w, ln_gamma, ln_beta)
    out = jax.block_until_ready(out)

    ref = jax.block_until_ready(_reference(x, conv_w, ln_gamma, ln_beta))
    np.testing.assert_allclose(np.asarray(out), np.asarray(ref), atol=1e-4, rtol=1e-4)

    print("KERNEL_OK")
</pallas_src>

<mosaic_0001>
module attributes {stable_mosaic.version = 11 : i64} {
  func.func @_conv_ln_kernel(%arg0: i32, %arg1: memref<16x96xf32, #tpu.memory_space<vmem>>, %arg2: memref<96x64xf32, #tpu.memory_space<vmem>>, %arg3: memref<1x64xf32, #tpu.memory_space<vmem>>, %arg4: memref<1x64xf32, #tpu.memory_space<vmem>>, %arg5: memref<16x64xf32, #tpu.memory_space<vmem>>) attributes {dimension_semantics = [#tpu.dimension_semantics<parallel>], iteration_bounds = array<i64: 1>, scalar_prefetch = 0 : i64, scratch_operands = 0 : i64, tpu.core_type = #tpu.core_type<tc>, window_params = [{transform_indices = @transform_0, window_bounds = array<i64: 16, 96>}, {pipeline_mode = #tpu.pipeline_mode<synchronous>, transform_indices = @transform_1, window_bounds = array<i64: 96, 64>}, {pipeline_mode = #tpu.pipeline_mode<synchronous>, transform_indices = @transform_2, window_bounds = array<i64: 1, 64>}, {pipeline_mode = #tpu.pipeline_mode<synchronous>, transform_indices = @transform_3, window_bounds = array<i64: 1, 64>}, {transform_indices = @transform_4, window_bounds = array<i64: 16, 64>}]} {
    %c0 = arith.constant 0 : index
    %c0_0 = arith.constant 0 : index
    %0 = vector.load %arg1[%c0, %c0_0] : memref<16x96xf32, #tpu.memory_space<vmem>>, vector<16x96xf32>
    %c0_1 = arith.constant 0 : index
    %c0_2 = arith.constant 0 : index
    %1 = vector.load %arg2[%c0_1, %c0_2] : memref<96x64xf32, #tpu.memory_space<vmem>>, vector<96x64xf32>
    %cst = arith.constant dense<0.000000e+00> : vector<16x64xf32>
    %2 = tpu.matmul %0, %1, %cst {dimension_numbers = #tpu.dot_dimension_numbers<[1], [0], [0], [1], [0, 0, 1, 1], [], []>} : vector<16x96xf32>, vector<96x64xf32>, vector<16x64xf32> -> vector<16x64xf32>
    %cst_3 = arith.constant dense<0.000000e+00> : vector<16xf32>
    %3 = vector.multi_reduction <add>, %2, %cst_3 [1] : vector<16x64xf32> to vector<16xf32>
    %4 = vector.shape_cast %3 : vector<16xf32> to vector<16x1xf32>
    %cst_4 = arith.constant 6.400000e+01 : f32
    %5 = vector.broadcast %cst_4 : f32 to vector<16x1xf32>
    %6 = arith.divf %4, %5 : vector<16x1xf32>
    %7 = vector.broadcast %6 : vector<16x1xf32> to vector<16x64xf32>
    %8 = arith.subf %2, %7 : vector<16x64xf32>
    %9 = arith.mulf %8, %8 : vector<16x64xf32>
    %cst_5 = arith.constant dense<0.000000e+00> : vector<16xf32>
    %10 = vector.multi_reduction <add>, %9, %cst_5 [1] : vector<16x64xf32> to vector<16xf32>
    %11 = vector.shape_cast %10 : vector<16xf32> to vector<16x1xf32>
    %cst_6 = arith.constant 6.400000e+01 : f32
    %12 = vector.broadcast %cst_6 : f32 to vector<16x1xf32>
    %13 = arith.divf %11, %12 : vector<16x1xf32>
    %cst_7 = arith.constant 9.99999974E-6 : f32
    %14 = vector.broadcast %cst_7 : f32 to vector<16x1xf32>
    %15 = arith.addf %13, %14 : vector<16x1xf32>
    %16 = math.rsqrt %15 : vector<16x1xf32>
    %17 = vector.broadcast %16 : vector<16x1xf32> to vector<16x64xf32>
    %18 = arith.mulf %8, %17 : vector<16x64xf32>
    %c0_8 = arith.constant 0 : index
    %c0_9 = arith.constant 0 : index
    %19 = vector.load %arg3[%c0_8, %c0_9] : memref<1x64xf32, #tpu.memory_space<vmem>>, vector<1x64xf32>
    %20 = vector.broadcast %19 : vector<1x64xf32> to vector<16x64xf32>
    %21 = arith.mulf %18, %20 : vector<16x64xf32>
    %c0_10 = arith.constant 0 : index
    %c0_11 = arith.constant 0 : index
    %22 = vector.load %arg4[%c0_10, %c0_11] : memref<1x64xf32, #tpu.memory_space<vmem>>, vector<1x64xf32>
    %23 = vector.broadcast %22 : vector<1x64xf32> to vector<16x64xf32>
    %24 = arith.addf %21, %23 : vector<16x64xf32>
    %c0_12 = arith.constant 0 : index
    %c0_13 = arith.constant 0 : index
    %25 = vector.load %arg5[%c0_12, %c0_13] : memref<16x64xf32, #tpu.memory_space<vmem>>, vector<16x64xf32>
    tpu.vector_store %arg5[%c0_12, %c0_13], %24 {strides = array<i32>} : memref<16x64xf32, #tpu.memory_space<vmem>>, vector<16x64xf32>,
    return
  }
  func.func @transform_0(%arg0: i32) -> (i32, i32) {
    %c0_i32 = arith.constant 0 : i32
    %c0_i32_0 = arith.constant 0 : i32
    return %arg0, %c0_i32 : i32, i32
  }
  func.func @transform_1(%arg0: i32) -> (i32, i32) {
    %c0_i32 = arith.constant 0 : i32
    %c0_i32_0 = arith.constant 0 : i32
    %c0_i32_1 = arith.constant 0 : i32
    return %c0_i32, %c0_i32_0 : i32, i32
  }
  func.func @transform_2(%arg0: i32) -> (i32, i32) {
    %c0_i32 = arith.constant 0 : i32
    %c0_i32_0 = arith.constant 0 : i32
    %c0_i32_1 = arith.constant 0 : i32
    return %c0_i32, %c0_i32_0 : i32, i32
  }
  func.func @transform_3(%arg0: i32) -> (i32, i32) {
    %c0_i32 = arith.constant 0 : i32
    %c0_i32_0 = arith.constant 0 : i32
    %c0_i32_1 = arith.constant 0 : i32
    return %c0_i32, %c0_i32_0 : i32, i32
  }
  func.func @transform_4(%arg0: i32) -> (i32, i32) {
    %c0_i32 = arith.constant 0 : i32
    %c0_i32_0 = arith.constant 0 : i32
    return %arg0, %c0_i32 : i32, i32
  }
}

</mosaic_0001>

<llo_original>
// kernel: tpu_custom_call.1
$region0: #{tpu_custom_call.1}
  #allocation0 [shape = 'u32[]', space=smem, size = 0x4, offset = 0x4, fixed_abs, tag = 'smem constant byte address 0x4 - core index']
  #allocation1 [shape = 'u32[144,128]{1,0:T(1,128)}', space=vmem, size = 0x12000, scoped, tag = 'internal scratch']
  %s0 = inlined_call_operand.vmem [shape: f32[16,96], index: 0, kind: input, shape index: {}]
  %s1 = inlined_call_operand.vmem [shape: f32[96,64], index: 1, kind: input, shape index: {}]
  %s2 = inlined_call_operand.vmem [shape: f32[1,64], index: 2, kind: input, shape index: {}]
  %s3 = inlined_call_operand.vmem [shape: f32[1,64], index: 3, kind: input, shape index: {}]
  %s4 = inlined_call_operand.hbm [shape: f32[16,64], index: 4, kind: output, shape index: {}]
  %s5 = sld [smem:[#allocation0]]
  $region26: #{tpu_custom_call.1} parent=0
    _
  %s7 = ssub.s32 1, %s5
  %s8 = scalar_select 0, %s7, %s5
  $region1: #{tpu_custom_call.1} parent=0
    #allocation2 [shape = 'u8[8192]{0}', space=vmem, size = 0x2000, scoped, tag = 'output window, operand 0, single buffered']
    #allocation3 [shape = 's32[1]{0}', space=sflag, size = 0x4, scoped, tag = 'scoped memory for tpu_custom_call.1']
    %9 = vsyncpa [#allocation3], 0
    // Predicated region
    $region2: #{tpu_custom_call.1} parent=1 // pred_check
      _
    $region3: #{tpu_custom_call.1} parent=1 // pred_check_branch
      %11 = sbr.rel (0) target = $region5
    $region4: #{tpu_custom_call.1} parent=1 // pred_region
      _
    $region5: #{tpu_custom_call.1} parent=1 // pred_fallthru
      _
    // Predicated region
    $region6: #{tpu_custom_call.1} parent=1 // pred_check
      _
    $region7: #{tpu_custom_call.1} parent=1 // pred_check_branch
      %13 = sbr.rel (0) target = $region9
    $region8: #{tpu_custom_call.1} parent=1 // pred_region
      _
    $region9: #{tpu_custom_call.1} parent=1 // pred_fallthru
      _
    // Predicated region
    $region10: #{tpu_custom_call.1} parent=1 // pred_check
      _
    $region11: #{tpu_custom_call.1} parent=1 // pred_check_branch
      %15 = sbr.rel (0) target = $region13
    $region12: #{tpu_custom_call.1} parent=1 // pred_region
      _
    $region13: #{tpu_custom_call.1} parent=1 // pred_fallthru
      _
    // Predicated region
    $region14: #{tpu_custom_call.1} parent=1 // pred_check
      _
    $region15: #{tpu_custom_call.1} parent=1 // pred_check_branch
      %17 = sbr.rel (0) target = $region17
    $region16: #{tpu_custom_call.1} parent=1 // pred_region
      _
    $region17: #{tpu_custom_call.1} parent=1 // pred_fallthru
      _
    %v18 = vld [vmem:[%s0] sm:$0xff]
    %v19 = vld [vmem:[%s0 + $0x8] sm:$0xff]
    %v20 = vld [vmem:[%s1] sm:$0xff]
    %v21 = vld [vmem:[%s1 + $0x8] sm:$0xff]
    %v22 = vld [vmem:[%s1 + $0x10] sm:$0xff]
    %v23 = vld [vmem:[%s1 + $0x18] sm:$0xff]
    %v24 = vld [vmem:[%s1 + $0x20] sm:$0xff]
    %v25 = vld [vmem:[%s1 + $0x28] sm:$0xff]
    %v26 = vld [vmem:[%s1 + $0x30] sm:$0xff]
    %v27 = vld [vmem:[%s1 + $0x38] sm:$0xff]
    %v28 = vld [vmem:[%s1 + $0x40] sm:$0xff]
    %v29 = vld [vmem:[%s1 + $0x48] sm:$0xff]
    %v30 = vld [vmem:[%s1 + $0x50] sm:$0xff]
    %v31 = vld [vmem:[%s1 + $0x58] sm:$0xff]
    %vm32 = vcmask 785408
    %v34 = vsel %vm32, %v18, 0
    %v37 = vsel %vm32, %v19, 0
    %39 = vmatprep.subr.mxu0 0.0
    %40 = vmatpush1.msra.mxu0 0.0
    %41 = vmatprep.subr.mxu0 0.0
    %42 = vmatpush1.msra.mxu0 0.0
    %43 = vmatprep.subr.mxu0 0.0
    %44 = vmatpush1.msra.mxu0 0.0
    %45 = vmatprep.subr.mxu0 0.0
    %46 = vmatpush1.msra.mxu0 0.0
    %47 = vmatprep.subr.mxu0 0.0
    %48 = vmatpush1.msra.mxu0 %v31
    %49 = vmatprep.subr.mxu0 0.0
    %50 = vmatpush1.msra.mxu0 %v30
    %51 = vmatprep.subr.mxu0 0.0
    %52 = vmatpush1.msra.mxu0 %v29
    %53 = vmatprep.subr.mxu0 0.0
    %54 = vmatpush1.msra.mxu0 %v28
    %55 = vmatprep.subr.mxu0 0.0
    %56 = vmatpush1.msra.mxu0 %v27
    %57 = vmatprep.subr.mxu0 0.0
    %58 = vmatpush1.msra.mxu0 %v26
    %59 = vmatprep.subr.mxu0 0.0
    %60 = vmatpush1.msra.mxu0 %v25
    %61 = vmatprep.subr.mxu0 0.0
    %62 = vmatpush1.msra.mxu0 %v24
    %63 = vmatprep.subr.mxu0 0.0
    %64 = vmatpush1.msra.mxu0 %v23
    %65 = vmatprep.subr.mxu0 0.0
    %66 = vmatpush1.msra.mxu0 %v22
    %67 = vmatprep.subr.mxu0 0.0
    %68 = vmatpush1.msra.mxu0 %v21
    %69 = vmatprep.subr.mxu0 0.0
    %70 = vmatpush1.msra.mxu0 %v20
    %71 = vmatprep.subr.mxu0 0.0
    %72 = vmatpush2.msra.mxu0 0.0
    %73 = vmatprep.subr.mxu0 0.0
    %74 = vmatpush2.msra.mxu0 0.0
    %75 = vmatprep.subr.mxu0 0.0
    %76 = vmatpush2.msra.mxu0 0.0
    %77 = vmatprep.subr.mxu0 0.0
    %78 = vmatpush2.msra.mxu0 0.0
    %79 = vmatprep.subr.mxu0 0.0
    %80 = vmatpush2.msra.mxu0 0.0
    %81 = vmatprep.subr.mxu0 0.0
    %82 = vmatpush2.msra.mxu0 0.0
    %83 = vmatprep.subr.mxu0 0.0
    %84 = vmatpush2.msra.mxu0 0.0
    %85 = vmatprep.subr.mxu0 0.0
    %86 = vmatpush2.msra.mxu0 0.0
    %87 = vmatprep.subr.mxu0 0.0
    %88 = vmatpush2.msra.mxu0 0.0
    %89 = vmatprep.subr.mxu0 0.0
    %90 = vmatpush2.msra.mxu0 0.0
    %91 = vmatprep.subr.mxu0 0.0
    %92 = vmatpush2.msra.mxu0 0.0
    %93 = vmatprep.subr.mxu0 0.0
    %94 = vmatpush2.msra.mxu0 0.0
    %95 = vmatprep.subr.mxu0 0.0
    %96 = vmatpush2.msra.mxu0 0.0
    %97 = vmatprep.subr.mxu0 0.0
    %98 = vmatpush2.msra.mxu0 0.0
    %99 = vmatprep.subr.mxu0 0.0
    %100 = vmatpush2.msra.mxu0 0.0
    %101 = vmatprep.subr.mxu0 0.0
    %102 = vmatpush2.msra.mxu0 0.0
    %103 = vmatprep.mubr.f32.mxu0 0.0
    %104 = vmatmul.mubr.f32.gmra.mxu0 %v34
    %v105 = vpop.f32.mrf.mxu0
    %v106 = vadd.f32 0.0, %v105
    %v107 = vpop.f32.mrf.mxu0
    %108 = vmatprep.mubr.f32.mxu0 0.0
    %109 = vmatmul.mubr.f32.gmra.mxu0 %v37
    %v110 = vpop.f32.mrf.mxu0
    %v111 = vadd.f32 0.0, %v110
    %v112 = vpop.f32.mrf.mxu0
    %113 = vdwg.mxu0
    %vm114 = vcmask 523264
    %v115 = vsel %vm114, %v106, 0.0
    %116 = vadd.xlane.f32.xlu0 %v115
    %v117 = vpop.xlane.xlu0 %116
    %v118 = vsel %vm114, %v111, 0.0
    %119 = vadd.xlane.f32.xlu0 %v118
    %v120 = vpop.xlane.xlu0 %119
    %v121 = vrcp.pop 64.0
    %v122 = vmul.f32 %v117, %v121
    %v123 = vmul.f32 %v120, %v121
    %v124 = vsub.f32 %v106, %v122
    %v125 = vsub.f32 %v111, %v123
    %v126 = vmul.f32 %v124, %v124
    %v127 = vmul.f32 %v125, %v125
    %v128 = vsel %vm114, %v126, 0.0
    %129 = vadd.xlane.f32.xlu0 %v128
    %v130 = vpop.xlane.xlu0 %129
    %v131 = vsel %vm114, %v127, 0.0
    %132 = vadd.xlane.f32.xlu0 %v131
    %v133 = vpop.xlane.xlu0 %132
    %v134 = vmul.f32 %v130, %v121
    %v135 = vmul.f32 %v133, %v121
    %v136 = vadd.f32 %v134, 1e-05
    %v137 = vadd.f32 %v135, 1e-05
    %v138 = vrsqrt.pop %v136
    %v139 = vrsqrt.pop %v137
    %v140 = vmul.f32 %v124, %v138
    %v141 = vmul.f32 %v125, %v139
    %v142 = vld [vmem:[%s2] sm:$0x1]
    %v144 = vlaneseq
    %v145 = vshrl.u32 %v144, 7
    %v146 = vsub.s32 0, %v145
    %v147 = vrot.slane %v142, %v146
    %v149 = vmul.f32 %v140, %v147
    %v150 = vmul.f32 %v141, %v147
    %v151 = vld [vmem:[%s3] sm:$0x1]
    %v153 = vlaneseq
    %v154 = vshrl.u32 %v153, 7
    %v155 = vsub.s32 0, %v154
    %v156 = vrot.slane %v151, %v155
    %v158 = vadd.f32 %v149, %v156
    %v159 = vadd.f32 %v150, %v156
    %160 = vst.msk [vmem:[#allocation2] sm:$0xff] %vm114, %v158
    %161 = vst.msk [vmem:[#allocation2 + $0x8] sm:$0xff] %vm114, %v159
    // Predicated region
    $region18: #{tpu_custom_call.1} parent=1 // pred_check
      _
    $region19: #{tpu_custom_call.1} parent=1 // pred_check_branch
      %163 = sbr.rel (0) target = $region21
    $region20: #{tpu_custom_call.1} parent=1 // pred_region
      %s165 = ssub.s32 256, 256
      %166 = vsyncadd [#allocation3], %s165
      %s167 = sshll.u32 [#allocation2], 4
      %s168 = int_to_ptr.vmem [resolvable:$true] %s167
      %173 = dma.vmem_to_hbm [thread:$0]  %s168, 256, %s4, [#allocation3], 128, 128, 8
    $region21: #{tpu_custom_call.1} parent=1 // pred_fallthru
      _
    // Predicated region
    $region22: #{tpu_custom_call.1} parent=1 // pred_check
      _
    $region23: #{tpu_custom_call.1} parent=1 // pred_check_branch
      %175 = sbr.rel (0) target = $region25
    $region24: #{tpu_custom_call.1} parent=1 // pred_region
      %176 = dma.done [#allocation3], 256
    $region25: #{tpu_custom_call.1} parent=1 // pred_fallthru
      _
    %177 = vsyncpa [#allocation3], 1

</llo_original>
